<compile_context>
chip_gen: v7x
topology: tpu7x:2x2x1
jax: 0.10.0
libtpu: 0.0.40
codegen_flags: <defaults>
</compile_context>

<pallas_src>
import functools

import jax
import jax.numpy as jnp
from jax import lax
from jax.experimental import pallas as pl
from jax.experimental.pallas import tpu as pltpu

_LANES = 128
_SUBLANES = 8
_MAX_TILE_ROWS = 2048   # (2048, 128) f32 = 1 MiB per input per pipeline buffer
_NUM_SPLITS = 2         # leading "parallel" axis -> both TensorCores on v7x


def _round_up(x, m):
    return ((x + m - 1) // m) * m


def _bce_partial_kernel(pred_ref, label_ref, out_ref, *, total_rows, hard_labels):
    """One (tile_rows, 128) tile of BCE -> per-split (8, 128) partial-sum slab."""
    c = pl.program_id(0)
    j = pl.program_id(1)
    steps = pl.num_programs(1)
    tile_rows = pred_ref.shape[0]

    @pl.when(j == 0)
    def _init():
        out_ref[...] = jnp.zeros_like(out_ref)

    p = pred_ref[...].astype(jnp.float32)
    y = label_ref[...].astype(jnp.float32)

    if hard_labels:
        # One log per element; exact only for labels in {0, 1}.
        q = jnp.where(y != 0.0, p, 1.0 - p)
        loss = -jnp.maximum(jnp.log(q), -100.0)
    else:
        # torch.nn.BCELoss semantics (soft targets allowed); logs clamped at -100.
        log_p = jnp.maximum(jnp.log(p), -100.0)
        log_1mp = jnp.maximum(jnp.log(1.0 - p), -100.0)
        loss = -(log_1mp + y * (log_p - log_1mp))

    # Mask rows past the logical extent: covers the partial last tile and any
    # dead (clamped) grid slot.  Padded-but-valid rows already contribute 0.
    row0 = (c * steps + j) * tile_rows
    rows_here = row0 + lax.broadcasted_iota(jnp.int32, (tile_rows, 1), 0)
    loss = jnp.where(rows_here < total_rows, loss, 0.0)

    # Fold rows to one (8, 128) vreg tile with pure elementwise (VPU) adds and
    # accumulate in the VMEM-resident output block (same block across all j).
    # TODO(synk): for N >> 1e8 consider pairwise/compensated accumulation.
    out_ref[...] += loss.reshape(-1, _SUBLANES, _LANES).sum(axis=0)


def bce_loss_mean(pred, label, *, hard_labels=False):
    """BCELoss(reduction='mean') of pred (N,1)/(N,) probabilities vs label (N,)."""
    n = int(pred.size)
    assert int(label.size) == n, (pred.shape, label.shape)

    pred_flat = pred.reshape(-1)
    label_flat = label.reshape(-1)  # native dtype; cast happens inside the kernel

    # Pad only up to the next multiple of 8*128 = 1024 elements (none if aligned).
    # Pad values (p=1, y=1) give exactly zero loss, so no element-level mask needed.
    padded = _round_up(max(n, 1), _SUBLANES * _LANES)
    if padded != n:
        pad = padded - n
        pred_flat = jnp.pad(pred_flat, (0, pad), constant_values=1)
        label_flat = jnp.pad(label_flat, (0, pad), constant_values=1)
    rows = padded // _LANES
    pred2d = pred_flat.reshape(rows, _LANES)    # free reshape (no copy)
    label2d = label_flat.reshape(rows, _LANES)

    tile_rows = min(_MAX_TILE_ROWS, rows)
    total_tiles = pl.cdiv(rows, tile_rows)      # NO rounding of rows to tile size
    num_splits = _NUM_SPLITS if total_tiles > 1 else 1
    steps = pl.cdiv(total_tiles, num_splits)

    def in_map(c, j):
        # Clamp so a dead slot (odd tile count split two ways) re-reads the last
        # real tile; its logical rows are >= `rows`, so the kernel masks it to 0.
        return (jnp.minimum(c * steps + j, total_tiles - 1), 0)

    kernel = functools.partial(
        _bce_partial_kernel, total_rows=rows, hard_labels=hard_labels)

    partials = pl.pallas_call(
        kernel,
        out_shape=jax.ShapeDtypeStruct((num_splits * _SUBLANES, _LANES), jnp.float32),
        grid=(num_splits, steps),
        in_specs=[
            pl.BlockSpec((tile_rows, _LANES), in_map),
            pl.BlockSpec((tile_rows, _LANES), in_map),
        ],
        out_specs=pl.BlockSpec((_SUBLANES, _LANES), lambda c, j: (c, 0)),
        compiler_params=pltpu.CompilerParams(
            dimension_semantics=("parallel", "arbitrary"),
        ),
    )(pred2d, label2d)

    # Tiny epilogue: one cross-lane reduce over the (splits*8, 128) partials and
    # the mean over the ORIGINAL element count.
    return jnp.sum(partials) / jnp.float32(n)


def loss_forward(pred, dummy, label, *, hard_labels=False):
    """Mirrors Loss.forward: returns (scalar BCE-mean loss, pred.reshape(-1))."""
    del dummy  # unused, as in the PyTorch module
    loss = bce_loss_mean(pred, label, hard_labels=hard_labels)
    return loss, pred.reshape(-1)


def _bce_ref(pred, label):
    p = pred.astype(jnp.float32).reshape(-1)
    y = label.astype(jnp.float32).reshape(-1)
    return jnp.mean(
        -(y * jnp.maximum(jnp.log(p), -100.0)
          + (1.0 - y) * jnp.maximum(jnp.log(1.0 - p), -100.0)))


if __name__ == "__main__":
    key = jax.random.PRNGKey(0)
    k_pred, k_label, k_dummy = jax.random.split(key, 3)

    # Small case matching the module's signature: pred (N,1), dummy (N,1), label (N,)
    N = 16
    pred = jax.nn.sigmoid(jax.random.normal(k_pred, (N, 1), dtype=jnp.float32))
    label = (jax.random.uniform(k_label, (N,)) > 0.5).astype(jnp.float32)
    dummy = jax.random.normal(k_dummy, (N, 1), dtype=jnp.float32)

    loss_val, pred_flat = loss_forward(pred, dummy, label)
    jax.block_until_ready(loss_val)
    jax.block_until_ready(pred_flat)
    ref = _bce_ref(pred, label)
    assert jnp.allclose(loss_val, ref, rtol=1e-5, atol=1e-6), (loss_val, ref)
    assert pred_flat.shape == (N,)

    # Single-log fast path (labels here are hard {0,1}).
    loss_hard = bce_loss_mean(pred, label, hard_labels=True)
    jax.block_until_ready(loss_hard)
    assert jnp.allclose(loss_hard, ref, rtol=1e-5, atol=1e-6), (loss_hard, ref)

    # 1024-aligned multi-tile case: zero-pad/zero-copy path, 2-way parallel split,
    # odd tile count (one clamped dead slot), int8 labels (narrow HBM traffic).
    N2 = 3 * _MAX_TILE_ROWS * _LANES  # 786432, exactly 3 tiles
    pred2 = jax.nn.sigmoid(jax.random.normal(k_dummy, (N2, 1), dtype=jnp.float32))
    label2 = (jax.random.uniform(k_pred, (N2,)) > 0.5).astype(jnp.int8)
    loss2, _ = loss_forward(pred2, None, label2)
    jax.block_until_ready(loss2)
    ref2 = _bce_ref(pred2, label2)
    assert jnp.allclose(loss2, ref2, rtol=1e-4, atol=1e-5), (loss2, ref2)

    # Non-aligned case: small (<1024-element) pad + masked partial last tile.
    N3 = _MAX_TILE_ROWS * _LANES + 100
    pred3 = jax.nn.sigmoid(jax.random.normal(k_label, (N3, 1), dtype=jnp.float32))
    label3 = (jax.random.uniform(k_dummy, (N3,)) > 0.5).astype(jnp.float32)
    loss3, _ = loss_forward(pred3, None, label3)
    jax.block_until_ready(loss3)
    ref3 = _bce_ref(pred3, label3)
    assert jnp.allclose(loss3, ref3, rtol=1e-4, atol=1e-5), (loss3, ref3)

    print("KERNEL_OK")
</pallas_src>

<mosaic_0001>
module attributes {stable_mosaic.version = 11 : i64} {
  func.func @_bce_partial_kernel(%arg0: i32, %arg1: i32, %arg2: memref<8x128xf32, #tpu.memory_space<vmem>>, %arg3: memref<8x128xf32, #tpu.memory_space<vmem>>, %arg4: memref<8x128xf32, #tpu.memory_space<vmem>>) attributes {dimension_semantics = [#tpu.dimension_semantics<parallel>, #tpu.dimension_semantics<arbitrary>], iteration_bounds = array<i64: 1, 1>, scalar_prefetch = 0 : i64, scratch_operands = 0 : i64, tpu.core_type = #tpu.core_type<tc>, window_params = [{transform_indices = @transform_0, window_bounds = array<i64: 8, 128>}, {transform_indices = @transform_1, window_bounds = array<i64: 8, 128>}, {transform_indices = @transform_2, window_bounds = array<i64: 8, 128>}]} {
    %c0_i32 = arith.constant 0 : i32
    %0 = arith.cmpi eq, %arg1, %c0_i32 : i32
    %1 = arith.extui %0 : i1 to i32
    %c0_i32_0 = arith.constant 0 : i32
    %2 = arith.cmpi ne, %1, %c0_i32_0 : i32
    scf.if %2 {
      %cst_14 = arith.constant 0.000000e+00 : f32
      %35 = vector.broadcast %cst_14 : f32 to vector<8x128xf32>
      %c0_15 = arith.constant 0 : index
      %c0_16 = arith.constant 0 : index
      %36 = vector.load %arg4[%c0_15, %c0_16] : memref<8x128xf32, #tpu.memory_space<vmem>>, vector<8x128xf32>
      tpu.vector_store %arg4[%c0_15, %c0_16], %35 {strides = array<i32>} : memref<8x128xf32, #tpu.memory_space<vmem>>, vector<8x128xf32>,
    } else {
    }
    %c0 = arith.constant 0 : index
    %c0_1 = arith.constant 0 : index
    %3 = vector.load %arg2[%c0, %c0_1] : memref<8x128xf32, #tpu.memory_space<vmem>>, vector<8x128xf32>
    %c0_2 = arith.constant 0 : index
    %c0_3 = arith.constant 0 : index
    %4 = vector.load %arg3[%c0_2, %c0_3] : memref<8x128xf32, #tpu.memory_space<vmem>>, vector<8x128xf32>
    %5 = math.log %3 : vector<8x128xf32>
    %cst = arith.constant -1.000000e+02 : f32
    %6 = vector.broadcast %cst : f32 to vector<8x128xf32>
    %7 = arith.maximumf %5, %6 : vector<8x128xf32>
    %cst_4 = arith.constant 1.000000e+00 : f32
    %8 = vector.broadcast %cst_4 : f32 to vector<8x128xf32>
    %9 = arith.subf %8, %3 : vector<8x128xf32>
    %10 = math.log %9 : vector<8x128xf32>
    %cst_5 = arith.constant -1.000000e+02 : f32
    %11 = vector.broadcast %cst_5 : f32 to vector<8x128xf32>
    %12 = arith.maximumf %10, %11 : vector<8x128xf32>
    %13 = arith.subf %7, %12 : vector<8x128xf32>
    %14 = arith.mulf %4, %13 : vector<8x128xf32>
    %15 = arith.addf %12, %14 : vector<8x128xf32>
    %cst_6 = arith.constant 0.000000e+00 : f32
    %16 = vector.broadcast %cst_6 : f32 to vector<8x128xf32>
    %17 = arith.subf %16, %15 : vector<8x128xf32>
    %c1_i32 = arith.constant 1 : i32
    %18 = arith.muli %arg0, %c1_i32 : i32
    %19 = arith.addi %18, %arg1 : i32
    %c8_i32 = arith.constant 8 : i32
    %20 = arith.muli %19, %c8_i32 : i32
    %21 = tpu.iota {dimensions = array<i32: 0>} : vector<8x1xi32>
    %22 = vector.broadcast %20 : i32 to vector<8x1xi32>
    %23 = arith.addi %22, %21 : vector<8x1xi32>
    %c8_i32_7 = arith.constant 8 : i32
    %24 = vector.broadcast %c8_i32_7 : i32 to vector<8x1xi32>
    %25 = arith.cmpi slt, %23, %24 : vector<8x1xi32>
    %cst_8 = arith.constant 0.000000e+00 : f32
    %26 = vector.shape_cast %25 : vector<8x1xi1> to vector<8x1xi1>
    %27 = vector.broadcast %26 : vector<8x1xi1> to vector<8x128xi1>
    %28 = vector.broadcast %cst_8 : f32 to vector<8x128xf32>
    %29 = arith.select %27, %17, %28 : vector<8x128xi1>, vector<8x128xf32>
    %c0_9 = arith.constant 0 : index
    %c0_10 = arith.constant 0 : index
    %30 = vector.load %arg4[%c0_9, %c0_10] : memref<8x128xf32, #tpu.memory_space<vmem>>, vector<8x128xf32>
    %31 = vector.shape_cast %29 : vector<8x128xf32> to vector<1x8x128xf32>
    %cst_11 = arith.constant dense<0.000000e+00> : vector<8x128xf32>
    %32 = vector.multi_reduction <add>, %31, %cst_11 [0] : vector<1x8x128xf32> to vector<8x128xf32>
    %33 = arith.addf %30, %32 : vector<8x128xf32>
    %c0_12 = arith.constant 0 : index
    %c0_13 = arith.constant 0 : index
    %34 = vector.load %arg4[%c0_12, %c0_13] : memref<8x128xf32, #tpu.memory_space<vmem>>, vector<8x128xf32>
    tpu.vector_store %arg4[%c0_12, %c0_13], %33 {strides = array<i32>} : memref<8x128xf32, #tpu.memory_space<vmem>>, vector<8x128xf32>,
    return
  }
  func.func @transform_0(%arg0: i32, %arg1: i32) -> (i32, i32) {
    %c1_i32 = arith.constant 1 : i32
    %0 = arith.muli %arg0, %c1_i32 : i32
    %1 = arith.addi %0, %arg1 : i32
    %c0_i32 = arith.constant 0 : i32
    %2 = arith.minsi %1, %c0_i32 : i32
    %c0_i32_0 = arith.constant 0 : i32
    %c0_i32_1 = arith.constant 0 : i32
    return %2, %c0_i32_0 : i32, i32
  }
  func.func @transform_1(%arg0: i32, %arg1: i32) -> (i32, i32) {
    %c1_i32 = arith.constant 1 : i32
    %0 = arith.muli %arg0, %c1_i32 : i32
    %1 = arith.addi %0, %arg1 : i32
    %c0_i32 = arith.constant 0 : i32
    %2 = arith.minsi %1, %c0_i32 : i32
    %c0_i32_0 = arith.constant 0 : i32
    %c0_i32_1 = arith.constant 0 : i32
    return %2, %c0_i32_0 : i32, i32
  }
  func.func @transform_2(%arg0: i32, %arg1: i32) -> (i32, i32) {
    %c0_i32 = arith.constant 0 : i32
    %c0_i32_0 = arith.constant 0 : i32
    return %arg0, %c0_i32 : i32, i32
  }
}

</mosaic_0001>

<llo_original>
// kernel: tpu_custom_call.1
$region0: #{tpu_custom_call.1}
  #allocation0 [shape = 'u32[]', space=smem, size = 0x4, offset = 0x4, fixed_abs, tag = 'smem constant byte address 0x4 - core index']
  #allocation1 [shape = 'u32[144,128]{1,0:T(1,128)}', space=vmem, size = 0x12000, scoped, tag = 'internal scratch']
  %s0 = inlined_call_operand.hbm [shape: f32[8,128], index: 0, kind: input, shape index: {}]
  %s1 = inlined_call_operand.hbm [shape: f32[8,128], index: 1, kind: input, shape index: {}]
  %s2 = inlined_call_operand.hbm [shape: f32[8,128], index: 2, kind: output, shape index: {}]
  %s3 = sld [smem:[#allocation0]]
  $region30: #{tpu_custom_call.1} parent=0
    _
  %s5 = ssub.s32 1, %s3
  %s6 = scalar_select 0, %s5, %s3
  $region1: #{tpu_custom_call.1} parent=0
    #allocation2 [shape = 'u8[4096]{0}', space=vmem, size = 0x1000, scoped, tag = 'input window, operand 0, single buffered']
    #allocation3 [shape = 's32[1]{0}', space=sflag, size = 0x4, scoped, tag = 'scoped memory for tpu_custom_call.1']
    #allocation4 [shape = 's32[1]{0}', space=sflag, size = 0x4, scoped, tag = 'scoped memory for tpu_custom_call.1']
    #allocation5 [shape = 'u8[4096]{0}', space=vmem, size = 0x1000, scoped, tag = 'input window, operand 1, single buffered']
    #allocation6 [shape = 's32[1]{0}', space=sflag, size = 0x4, scoped, tag = 'scoped memory for tpu_custom_call.1']
    #allocation7 [shape = 'u8[4096]{0}', space=vmem, size = 0x1000, scoped, tag = 'output window, operand 0, single buffered']
    %7 = vsyncpa [#allocation3], 0
    %8 = vsyncpa [#allocation6], 0
    %9 = vsyncpa [#allocation4], 0
    // Predicated region
    $region2: #{tpu_custom_call.1} parent=1 // pred_check
      _
    $region3: #{tpu_custom_call.1} parent=1 // pred_check_branch
      %11 = sbr.rel (0) target = $region5
    $region4: #{tpu_custom_call.1} parent=1 // pred_region
      %s12 = sadd.s32 0, 0
      %p13 = scmp.lt.s32.totalorder %s12, 0
      %s14 = scalar_select %p13, %s12, 0
      %s16 = ssub.s32 128, 128
      %17 = vsyncadd [#allocation3], %s16
      %s18 = smul.addr %s14, 128
      %s19 = scalar_lea.hbm %s0, %s18
      %s21 = sshll.u32 [#allocation2], 4
      %s22 = int_to_ptr.vmem [resolvable:$true] %s21
      %24 = dma.hbm_to_vmem [thread:$0]  %s19, 128, %s22, [#allocation3]
    $region5: #{tpu_custom_call.1} parent=1 // pred_fallthru
      _
    // Predicated region
    $region6: #{tpu_custom_call.1} parent=1 // pred_check
      _
    $region7: #{tpu_custom_call.1} parent=1 // pred_check_branch
      %26 = sbr.rel (0) target = $region9
    $region8: #{tpu_custom_call.1} parent=1 // pred_region
      %s27 = sadd.s32 0, 0
      %p28 = scmp.lt.s32.totalorder %s27, 0
      %s29 = scalar_select %p28, %s27, 0
      %s31 = ssub.s32 128, 128
      %32 = vsyncadd [#allocation6], %s31
      %s33 = smul.addr %s29, 128
      %s34 = scalar_lea.hbm %s1, %s33
      %s36 = sshll.u32 [#allocation5], 4
      %s37 = int_to_ptr.vmem [resolvable:$true] %s36
      %39 = dma.hbm_to_vmem [thread:$0]  %s34, 128, %s37, [#allocation6]
    $region9: #{tpu_custom_call.1} parent=1 // pred_fallthru
      _
    // Predicated region
    $region10: #{tpu_custom_call.1} parent=1 // pred_check
      _
    $region11: #{tpu_custom_call.1} parent=1 // pred_check_branch
      %41 = sbr.rel (0) target = $region13
    $region12: #{tpu_custom_call.1} parent=1 // pred_region
      %42 = dma.done [#allocation3], 128
    $region13: #{tpu_custom_call.1} parent=1 // pred_fallthru
      _
    // Predicated region
    $region14: #{tpu_custom_call.1} parent=1 // pred_check
      _
    $region15: #{tpu_custom_call.1} parent=1 // pred_check_branch
      %44 = sbr.rel (0) target = $region17
    $region16: #{tpu_custom_call.1} parent=1 // pred_region
      %45 = dma.done [#allocation6], 128
    $region17: #{tpu_custom_call.1} parent=1 // pred_fallthru
      _
    %s46 = sadd.s32 0, 0
    %p47 = scmp.lt.s32.totalorder %s46, 0
    %s48 = scalar_select %p47, %s46, 0
    %s49 = sadd.s32 0, 0
    %p50 = scmp.lt.s32.totalorder %s49, 0
    %s51 = scalar_select %p50, %s49, 0
    %p52 = scmp.eq.s32.totalorder 0, 0
    // Predicated region
    $region18: #{tpu_custom_call.1} parent=1 // pred_check
      %p53 = pneg %p52
    $region19: #{tpu_custom_call.1} parent=1 // pred_check_branch
      %55 = sbr.rel (%p53) target = $region21
    $region20: #{tpu_custom_call.1} parent=1 // pred_region
      %56 = vst [vmem:[#allocation7] sm:$0xff] 0.0
    $region21: #{tpu_custom_call.1} parent=1 // pred_fallthru
      _
    %v57 = vld [vmem:[#allocation2] sm:$0xff]
    %v58 = vld [vmem:[#allocation5] sm:$0xff]
    %v59 = vlog2.pop %v57
    %v60 = vmul.f32 %v59, 0.6931472
    %v61 = vmax.f32 %v60, -100.0
    %v62 = vsub.f32 1.0, %v57
    %v63 = vlog2.pop %v62
    %v64 = vmul.f32 %v63, 0.6931472
    %v65 = vmax.f32 %v64, -100.0
    %v66 = vsub.f32 %v61, %v65
    %v67 = vmul.f32 %v58, %v66
    %v68 = vadd.f32 %v65, %v67
    %v69 = vsub.f32 0.0, %v68
    %s70 = sadd.s32 0, 0
    %s71 = smul.u32 %s70, 8
    %v72 = vlaneseq
    %v73 = vshrl.u32 %v72, 7
    %v74 = vstv %s71
    %v75 = vadd.s32 %v74, %v73
    %vm76 = vcmp.lt.s32.totalorder %v75, 8
    %v77 = vsel %vm76, 1, 0
    %vm78 = vcmp.eq.s32.totalorder %v77, 1
    %v79 = vsel %vm78, %v69, 0.0
    %v80 = vld [vmem:[#allocation7] sm:$0xff]
    %v81 = vadd.f32 %v79, 0.0
    %v82 = vadd.f32 %v80, %v81
    %83 = vst [vmem:[#allocation7] sm:$0xff] %v82
    // Predicated region
    $region22: #{tpu_custom_call.1} parent=1 // pred_check
      _
    $region23: #{tpu_custom_call.1} parent=1 // pred_check_branch
      %85 = sbr.rel (0) target = $region25
    $region24: #{tpu_custom_call.1} parent=1 // pred_region
      %s87 = ssub.s32 128, 128
      %88 = vsyncadd [#allocation4], %s87
      %s90 = sshll.u32 [#allocation7], 4
      %s91 = int_to_ptr.vmem [resolvable:$true] %s90
      %93 = dma.vmem_to_hbm [thread:$0]  %s91, 128, %s2, [#allocation4]
    $region25: #{tpu_custom_call.1} parent=1 // pred_fallthru
      _
    // Predicated region
    $region26: #{tpu_custom_call.1} parent=1 // pred_check
      _
    $region27: #{tpu_custom_call.1} parent=1 // pred_check_branch
      %95 = sbr.rel (0) target = $region29
    $region28: #{tpu_custom_call.1} parent=1 // pred_region
      %96 = dma.done [#allocation4], 128
    $region29: #{tpu_custom_call.1} parent=1 // pred_fallthru
      _
    %97 = vsyncpa [#allocation3], 1
    %98 = vsyncpa [#allocation6], 1
    %99 = vsyncpa [#allocation4], 1

</llo_original>
